<compile_context>
chip_gen: v6e
topology: v6e:2x2x1
jax: 0.10.0
libtpu: 0.0.40
codegen_flags: <defaults>
</compile_context>

<pallas_src>
import functools

import jax
import jax.numpy as jnp
from jax.experimental import pallas as pl
from jax.experimental.pallas import tpu as pltpu


def _round_up(x, m):
    return ((x + m - 1) // m) * m


def _device_kind():
    try:
        return jax.devices()[0].device_kind.lower()
    except Exception:
        return ""


def _vmem_capacity_bytes(kind):
    try:
        info = pltpu.get_tpu_info()
        cap = getattr(info, "vmem_capacity_bytes", None)
        if cap:
            return int(cap)
    except Exception:
        pass
    # Fallback: v7x has 64 MiB per TensorCore, v5e/v6e have 128 MiB.
    return (64 << 20) if "v7" in kind else (128 << 20)


def _pad2(a, rows, cols):
    pr, pc = rows - a.shape[0], cols - a.shape[1]
    if pr == 0 and pc == 0:
        return a
    return jnp.pad(a, ((0, pr), (0, pc)))


def _pad1(a, n):
    p = n - a.shape[0]
    return a if p == 0 else jnp.pad(a, (0, p))


# ----------------------------------------------------------------------------
# Kernel
# ----------------------------------------------------------------------------
def _ffn_kernel(x_ref, w1_ref, b1_ref, w2_ref, b2_ref, o_ref, acc_ref,
                *, bf16_epilogue):
    k = pl.program_id(2)

    @pl.when(k == 0)
    def _():
        acc_ref[...] = jnp.zeros_like(acc_ref)

    # Matmul-1 chunk on the MXU with f32 accumulation:
    # (tm, d_model) @ (d_model, tf) -> (tm, tf)
    h = jnp.dot(x_ref[...], w1_ref[...], preferred_element_type=jnp.float32)

    if bf16_epilogue:
        # bf16 VALU (v6e/v7x): halves VALU work and the live (tm, tf) footprint.
        h = jnp.maximum(h.astype(jnp.bfloat16) + b1_ref[...].astype(jnp.bfloat16),
                        0.0)
    else:
        # f32 VPU path (v5e has no bf16 VALU); cast only at the MXU boundary.
        h = jnp.maximum(h + b1_ref[...], 0.0)

    # Matmul-2 chunk, accumulated across the d_ff (k) grid axis in f32 VMEM:
    # (tm, tf) @ (tf, tn) -> (tm, tn)
    acc_ref[...] += jnp.dot(h.astype(w2_ref.dtype), w2_ref[...],
                            preferred_element_type=jnp.float32)

    @pl.when(k == pl.num_programs(2) - 1)
    def _():
        o_ref[...] = (acc_ref[...] + b2_ref[...]).astype(o_ref.dtype)


# ----------------------------------------------------------------------------
# Geometry / tiling selection
# ----------------------------------------------------------------------------
def _ffn_geometry(rows, d_model, d_ff, *, tm=None, tf=None, tn=None,
                  compute_dtype=jnp.bfloat16):
    kind = _device_kind()
    vmem_cap = _vmem_capacity_bytes(kind)
    vmem_budget = int(vmem_cap * 0.80)   # headroom for compiler temporaries

    isz = jnp.dtype(compute_dtype).itemsize

    dmc = _round_up(d_model, 128)        # padded contraction dim (x / w1 rows)
    d_ff_128 = _round_up(d_ff, 128)

    # d_ff chunk (reduction axis): big -> fewer accumulator RMW passes.
    if tf is None:
        tf = 1024
    tf = max(128, _round_up(min(tf, d_ff_128), 128))

    # Output-N tile: full d_model when small, else <= 2048 (bounds VMEM on v7x
    # and provides a second parallel axis for its 2 TensorCores).
    if tn is None:
        tn = dmc if dmc <= 2048 else 2048
    tn = max(128, _round_up(min(tn, dmc), 128))

    # Row tile: as big as possible (weight arithmetic intensity ~ tm flops/B).
    if tm is None:
        tm = 1024 if rows >= 4096 else 512
    tm = max(16, _round_up(min(tm, _round_up(rows, 16)), 16))
    # v7x megacore: if the n axis has a single tile, make sure the (parallel)
    # row axis has >= 2 tiles whenever the row count allows it.
    if (_round_up(dmc, tn) // tn) < 2 and _round_up(rows, 16) >= 32:
        tm = min(tm, max(16, _round_up((rows + 1) // 2, 16)))

    def need(tm_, tn_, tf_, wbuf):
        return (2 * tm_ * dmc * isz            # x block (double buffered)
                + wbuf * dmc * tf_ * isz       # w1 chunk
                + 2 * tf_ * 4                  # b1 chunk (f32)
                + wbuf * tf_ * tn_ * isz       # w2 chunk
                + 2 * tn_ * 4                  # b2 tile (f32)
                + 2 * tm_ * tn_ * 4            # out block (<= f32)
                + tm_ * tn_ * 4                # f32 accumulator scratch
                + tm_ * tf_ * 4)               # matmul-1 intermediate headroom

    # Auto-shrink to fit this chip's VMEM: tf first, then tn, then tm.
    while need(tm, tn, tf, 2) > vmem_budget:
        if tf > 256:
            tf = max(256, _round_up(tf // 2, 128))
        elif tn > 512:
            tn = max(128, _round_up(tn // 2, 128))
        elif tm > 128:
            tm = max(16, _round_up(tm // 2, 16))
        else:
            break

    d_ff_p = _round_up(d_ff, tf)
    dmo = _round_up(dmc, tn)             # padded output dim (w2 cols / out / b2)

    # Optional third weight buffer on v6e (rides out DMA jitter) if it fits.
    weight_buffers = 3 if ("v6" in kind and need(tm, tn, tf, 3) <= vmem_budget) else 2

    vmem_limit = int(min(vmem_cap * 0.85,
                         max(32 * 1024 * 1024,
                             1.5 * need(tm, tn, tf, weight_buffers))))

    bf16_epilogue = (compute_dtype == jnp.bfloat16) and ("v5" not in kind)

    return dict(tm=tm, tf=tf, tn=tn, dmc=dmc, dmo=dmo, d_ff_p=d_ff_p,
                weight_buffers=weight_buffers, vmem_limit=vmem_limit,
                bf16_epilogue=bf16_epilogue)


# ----------------------------------------------------------------------------
# Parameter preparation (hoisted out of the hot path) and application
# ----------------------------------------------------------------------------
def ffn_prepare(w1, b1, w2, b2, *, rows, tm=None, tf=None, tn=None,
                compute_dtype=jnp.bfloat16):
    """Pad + cast the weights once; reuse the result across many ffn_apply calls."""
    d_model, d_ff = w1.shape
    assert w2.shape == (d_ff, d_model)
    g = _ffn_geometry(rows, d_model, d_ff, tm=tm, tf=tf, tn=tn,
                      compute_dtype=compute_dtype)
    cd = compute_dtype
    # TODO(synk): optional fp8 weight storage (per-channel scales) for v7x would
    # halve the dominant weight HBM traffic; not implemented here.
    w1_p = _pad2(w1.astype(cd), g["dmc"], g["d_ff_p"])
    w2_p = _pad2(w2.astype(cd), g["d_ff_p"], g["dmo"])
    b1_p = _pad1(b1.astype(jnp.float32), g["d_ff_p"]).reshape(1, g["d_ff_p"])
    b2_p = _pad1(b2.astype(jnp.float32), g["dmo"]).reshape(1, g["dmo"])
    return dict(geom=g, w1=w1_p, b1=b1_p, w2=w2_p, b2=b2_p,
                d_model=d_model, d_ff=d_ff, compute_dtype=cd)


def ffn_apply(x, prepared):
    """x: (batch, seq, d_model). Returns (batch, seq, d_model) in x.dtype."""
    g = prepared["geom"]
    cd = prepared["compute_dtype"]
    batch, seq, d_model = x.shape
    assert d_model == prepared["d_model"]
    M = batch * seq
    out_dtype = x.dtype

    tm = min(g["tm"], _round_up(M, 16))
    tn, tf = g["tn"], g["tf"]
    dmc, dmo, d_ff_p = g["dmc"], g["dmo"], g["d_ff_p"]
    M_p = _round_up(M, tm)

    x2 = _pad2(x.reshape(M, d_model).astype(cd), M_p, dmc)

    grid = (M_p // tm, dmo // tn, d_ff_p // tf)
    grid_i, grid_n, _ = grid

    w_kwargs = {}
    if g["weight_buffers"] > 2:
        w_kwargs = dict(pipeline_mode=pl.Buffered(g["weight_buffers"]))

    isz = jnp.dtype(cd).itemsize
    osz = jnp.dtype(out_dtype).itemsize
    flops = 2 * M_p * dmc * d_ff_p + 2 * M_p * d_ff_p * dmo
    # Weights are re-streamed once per (row tile [, n tile]) pass.
    bytes_accessed = (M_p * dmc * isz
                      + grid_i * grid_n * dmc * d_ff_p * isz
                      + grid_i * d_ff_p * dmo * isz
                      + grid_i * grid_n * (d_ff_p + dmo) * 4
                      + M_p * dmo * osz)

    kernel = functools.partial(_ffn_kernel, bf16_epilogue=g["bf16_epilogue"])

    out2 = pl.pallas_call(
        kernel,
        out_shape=jax.ShapeDtypeStruct((M_p, dmo), out_dtype),
        grid_spec=pltpu.PrefetchScalarGridSpec(
            num_scalar_prefetch=0,
            grid=grid,
            in_specs=[
                pl.BlockSpec((tm, dmc), lambda i, n, k: (i, 0)),            # x rows
                pl.BlockSpec((dmc, tf), lambda i, n, k: (0, k), **w_kwargs),  # w1 chunk
                pl.BlockSpec((1, tf), lambda i, n, k: (0, k)),              # b1 chunk
                pl.BlockSpec((tf, tn), lambda i, n, k: (k, n), **w_kwargs),  # w2 chunk
                pl.BlockSpec((1, tn), lambda i, n, k: (0, n)),              # b2 tile
            ],
            out_specs=pl.BlockSpec((tm, tn), lambda i, n, k: (i, n)),
            scratch_shapes=[pltpu.VMEM((tm, tn), jnp.float32)],
        ),
        compiler_params=pltpu.CompilerParams(
            dimension_semantics=("parallel", "parallel", "arbitrary"),
            vmem_limit_bytes=g["vmem_limit"]),
        cost_estimate=pl.CostEstimate(
            flops=flops, transcendentals=0, bytes_accessed=bytes_accessed),
    )(x2, prepared["w1"], prepared["b1"], prepared["w2"], prepared["b2"])

    return out2[:M, :d_model].reshape(batch, seq, d_model)


def ffn_pallas(x, w1, b1, w2, b2, **kwargs):
    """Convenience one-shot wrapper (prepare + apply)."""
    prepared = ffn_prepare(w1, b1, w2, b2, rows=x.shape[0] * x.shape[1], **kwargs)
    return ffn_apply(x, prepared)


def ffn_reference(x, w1, b1, w2, b2):
    h = jnp.maximum(x @ w1 + b1, 0.0)
    return h @ w2 + b2


if __name__ == "__main__":
    # Config: d_model=32 -> d_ff=4*32=128 ; batch=2, seq=8
    batch, seq, d_model = 2, 8, 32
    d_ff = 4 * d_model

    key = jax.random.PRNGKey(0)
    kx, kw1, kb1, kw2, kb2 = jax.random.split(key, 5)

    x = jax.random.normal(kx, (batch, seq, d_model), dtype=jnp.float32)
    # Deterministic parameter init (PyTorch Linear-like uniform bound 1/sqrt(fan_in))
    bound1 = 1.0 / (d_model ** 0.5)
    bound2 = 1.0 / (d_ff ** 0.5)
    w1 = jax.random.uniform(kw1, (d_model, d_ff), jnp.float32, -bound1, bound1)
    b1 = jax.random.uniform(kb1, (d_ff,), jnp.float32, -bound1, bound1)
    w2 = jax.random.uniform(kw2, (d_ff, d_model), jnp.float32, -bound2, bound2)
    b2 = jax.random.uniform(kb2, (d_model,), jnp.float32, -bound2, bound2)

    # Weight pad / bf16 cast hoisted out of the hot path (done once).
    prepared = ffn_prepare(w1, b1, w2, b2, rows=batch * seq)
    out = jax.block_until_ready(ffn_apply(x, prepared))

    ref = ffn_reference(x, w1, b1, w2, b2)
    assert out.shape == (batch, seq, d_model)
    assert out.dtype == x.dtype
    # bf16 operands with f32 MXU accumulation -> loosened tolerance vs f32 ref.
    assert jnp.allclose(out, ref, atol=5e-2, rtol=5e-2), "mismatch vs reference"

    print("KERNEL_OK")
</pallas_src>

<mosaic_0001>
module attributes {stable_mosaic.version = 11 : i64} {
  func.func @_ffn_kernel(%arg0: i32, %arg1: i32, %arg2: i32, %arg3: memref<16x128xbf16, #tpu.memory_space<vmem>>, %arg4: memref<128x128xbf16, #tpu.memory_space<vmem>>, %arg5: memref<1x128xf32, #tpu.memory_space<vmem>>, %arg6: memref<128x128xbf16, #tpu.memory_space<vmem>>, %arg7: memref<1x128xf32, #tpu.memory_space<vmem>>, %arg8: memref<16x128xf32, #tpu.memory_space<vmem>>, %arg9: memref<16x128xf32, #tpu.memory_space<vmem>>) attributes {dimension_semantics = [#tpu.dimension_semantics<parallel>, #tpu.dimension_semantics<parallel>, #tpu.dimension_semantics<arbitrary>], iteration_bounds = array<i64: 1, 1, 1>, scalar_prefetch = 0 : i64, scratch_operands = 1 : i64, tpu.core_type = #tpu.core_type<tc>, window_params = [{transform_indices = @transform_0, window_bounds = array<i64: 16, 128>}, {transform_indices = @transform_1, window_bounds = array<i64: 128, 128>}, {transform_indices = @transform_2, window_bounds = array<i64: 1, 128>}, {transform_indices = @transform_3, window_bounds = array<i64: 128, 128>}, {transform_indices = @transform_4, window_bounds = array<i64: 1, 128>}, {transform_indices = @transform_5, window_bounds = array<i64: 16, 128>}]} {
    %c0_i32 = arith.constant 0 : i32
    %0 = arith.cmpi eq, %arg2, %c0_i32 : i32
    %1 = arith.extui %0 : i1 to i32
    %c0_i32_0 = arith.constant 0 : i32
    %2 = arith.cmpi ne, %1, %c0_i32_0 : i32
    scf.if %2 {
      %cst_16 = arith.constant 0.000000e+00 : f32
      %21 = vector.broadcast %cst_16 : f32 to vector<16x128xf32>
      %c0_17 = arith.constant 0 : index
      %c0_18 = arith.constant 0 : index
      %22 = vector.load %arg9[%c0_17, %c0_18] : memref<16x128xf32, #tpu.memory_space<vmem>>, vector<16x128xf32>
      tpu.vector_store %arg9[%c0_17, %c0_18], %21 {strides = array<i32>} : memref<16x128xf32, #tpu.memory_space<vmem>>, vector<16x128xf32>,
    } else {
    }
    %c0 = arith.constant 0 : index
    %c0_1 = arith.constant 0 : index
    %3 = vector.load %arg3[%c0, %c0_1] : memref<16x128xbf16, #tpu.memory_space<vmem>>, vector<16x128xbf16>
    %c0_2 = arith.constant 0 : index
    %c0_3 = arith.constant 0 : index
    %4 = vector.load %arg4[%c0_2, %c0_3] : memref<128x128xbf16, #tpu.memory_space<vmem>>, vector<128x128xbf16>
    %cst = arith.constant dense<0.000000e+00> : vector<16x128xf32>
    %5 = tpu.matmul %3, %4, %cst {dimension_numbers = #tpu.dot_dimension_numbers<[1], [0], [0], [1], [0, 0, 1, 1], [], []>} : vector<16x128xbf16>, vector<128x128xbf16>, vector<16x128xf32> -> vector<16x128xf32>
    %6 = arith.truncf %5 : vector<16x128xf32> to vector<16x128xbf16>
    %c0_4 = arith.constant 0 : index
    %c0_5 = arith.constant 0 : index
    %7 = vector.load %arg5[%c0_4, %c0_5] : memref<1x128xf32, #tpu.memory_space<vmem>>, vector<1x128xf32>
    %8 = arith.truncf %7 : vector<1x128xf32> to vector<1x128xbf16>
    %9 = vector.broadcast %8 : vector<1x128xbf16> to vector<16x128xbf16>
    %10 = arith.addf %6, %9 : vector<16x128xbf16>
    %cst_6 = arith.constant 0.000000e+00 : bf16
    %11 = vector.broadcast %cst_6 : bf16 to vector<16x128xbf16>
    %12 = arith.maximumf %10, %11 : vector<16x128xbf16>
    %c0_7 = arith.constant 0 : index
    %c0_8 = arith.constant 0 : index
    %13 = vector.load %arg9[%c0_7, %c0_8] : memref<16x128xf32, #tpu.memory_space<vmem>>, vector<16x128xf32>
    %c0_9 = arith.constant 0 : index
    %c0_10 = arith.constant 0 : index
    %14 = vector.load %arg6[%c0_9, %c0_10] : memref<128x128xbf16, #tpu.memory_space<vmem>>, vector<128x128xbf16>
    %cst_11 = arith.constant dense<0.000000e+00> : vector<16x128xf32>
    %15 = tpu.matmul %12, %14, %cst_11 {dimension_numbers = #tpu.dot_dimension_numbers<[1], [0], [0], [1], [0, 0, 1, 1], [], []>} : vector<16x128xbf16>, vector<128x128xbf16>, vector<16x128xf32> -> vector<16x128xf32>
    %16 = arith.addf %13, %15 : vector<16x128xf32>
    %c0_12 = arith.constant 0 : index
    %c0_13 = arith.constant 0 : index
    %17 = vector.load %arg9[%c0_12, %c0_13] : memref<16x128xf32, #tpu.memory_space<vmem>>, vector<16x128xf32>
    tpu.vector_store %arg9[%c0_12, %c0_13], %16 {strides = array<i32>} : memref<16x128xf32, #tpu.memory_space<vmem>>, vector<16x128xf32>,
    %c0_i32_14 = arith.constant 0 : i32
    %18 = arith.cmpi eq, %arg2, %c0_i32_14 : i32
    %19 = arith.extui %18 : i1 to i32
    %c0_i32_15 = arith.constant 0 : i32
    %20 = arith.cmpi ne, %19, %c0_i32_15 : i32
    scf.if %20 {
      %c0_16 = arith.constant 0 : index
      %c0_17 = arith.constant 0 : index
      %21 = vector.load %arg9[%c0_16, %c0_17] : memref<16x128xf32, #tpu.memory_space<vmem>>, vector<16x128xf32>
      %c0_18 = arith.constant 0 : index
      %c0_19 = arith.constant 0 : index
      %22 = vector.load %arg7[%c0_18, %c0_19] : memref<1x128xf32, #tpu.memory_space<vmem>>, vector<1x128xf32>
      %23 = vector.broadcast %22 : vector<1x128xf32> to vector<16x128xf32>
      %24 = arith.addf %21, %23 : vector<16x128xf32>
      %c0_20 = arith.constant 0 : index
      %c0_21 = arith.constant 0 : index
      %25 = vector.load %arg8[%c0_20, %c0_21] : memref<16x128xf32, #tpu.memory_space<vmem>>, vector<16x128xf32>
      tpu.vector_store %arg8[%c0_20, %c0_21], %24 {strides = array<i32>} : memref<16x128xf32, #tpu.memory_space<vmem>>, vector<16x128xf32>,
    } else {
    }
    return
  }
  func.func @transform_0(%arg0: i32, %arg1: i32, %arg2: i32) -> (i32, i32) {
    %c0_i32 = arith.constant 0 : i32
    %c0_i32_0 = arith.constant 0 : i32
    return %arg0, %c0_i32 : i32, i32
  }
  func.func @transform_1(%arg0: i32, %arg1: i32, %arg2: i32) -> (i32, i32) {
    %c0_i32 = arith.constant 0 : i32
    %c0_i32_0 = arith.constant 0 : i32
    return %c0_i32, %arg2 : i32, i32
  }
  func.func @transform_2(%arg0: i32, %arg1: i32, %arg2: i32) -> (i32, i32) {
    %c0_i32 = arith.constant 0 : i32
    %c0_i32_0 = arith.constant 0 : i32
    return %c0_i32, %arg2 : i32, i32
  }
  func.func @transform_3(%arg0: i32, %arg1: i32, %arg2: i32) -> (i32, i32) {
    %c0_i32 = arith.constant 0 : i32
    return %arg2, %arg1 : i32, i32
  }
  func.func @transform_4(%arg0: i32, %arg1: i32, %arg2: i32) -> (i32, i32) {
    %c0_i32 = arith.constant 0 : i32
    %c0_i32_0 = arith.constant 0 : i32
    return %c0_i32, %arg1 : i32, i32
  }
  func.func @transform_5(%arg0: i32, %arg1: i32, %arg2: i32) -> (i32, i32) {
    %c0_i32 = arith.constant 0 : i32
    return %arg0, %arg1 : i32, i32
  }
}

</mosaic_0001>

<llo_original>
// kernel: tpu_custom_call.1
$region0: #{tpu_custom_call.1}
  #allocation0 [shape = 'u32[]', space=smem, size = 0x4, offset = 0x4, fixed_abs, tag = 'smem constant byte address 0x4 - core index']
  #allocation1 [shape = 'u32[144,128]{1,0:T(1,128)}', space=vmem, size = 0x12000, scoped, tag = 'internal scratch']
  #allocation2 [shape = 'f32[16,128]{1,0:T(8,128)}', space=vmem, size = 0x2000, scoped, tag = 'scratch operand']
  %s0 = inlined_call_operand.hbm [shape: bf16[16,128], index: 0, kind: input, shape index: {}]
  %s1 = inlined_call_operand.hbm [shape: bf16[128,128], index: 1, kind: input, shape index: {}]
  %s2 = inlined_call_operand.vmem [shape: f32[1,128], index: 2, kind: input, shape index: {}]
  %s3 = inlined_call_operand.hbm [shape: bf16[128,128], index: 3, kind: input, shape index: {}]
  %s4 = inlined_call_operand.vmem [shape: f32[1,128], index: 4, kind: input, shape index: {}]
  %s5 = inlined_call_operand.hbm [shape: f32[16,128], index: 5, kind: output, shape index: {}]
  %s6 = sld [smem:[#allocation0]]
  $region50: #{tpu_custom_call.1} parent=0
    _
  %s8 = ssub.s32 1, %s6
  %s9 = scalar_select 0, %s8, %s6
  $region1: #{tpu_custom_call.1} parent=0
    #allocation3 [shape = 'u8[4096]{0}', space=vmem, size = 0x1000, scoped, tag = 'input window, operand 0, single buffered']
    #allocation4 [shape = 's32[1]{0}', space=sflag, size = 0x4, scoped, tag = 'scoped memory for tpu_custom_call.1']
    #allocation5 [shape = 's32[1]{0}', space=sflag, size = 0x4, scoped, tag = 'scoped memory for tpu_custom_call.1']
    #allocation6 [shape = 'u8[32768]{0}', space=vmem, size = 0x8000, scoped, tag = 'input window, operand 1, single buffered']
    #allocation7 [shape = 's32[1]{0}', space=sflag, size = 0x4, scoped, tag = 'scoped memory for tpu_custom_call.1']
    #allocation8 [shape = 'u8[32768]{0}', space=vmem, size = 0x8000, scoped, tag = 'input window, operand 3, single buffered']
    #allocation9 [shape = 'u8[8192]{0}', space=vmem, size = 0x2000, scoped, tag = 'output window, operand 0, single buffered']
    %10 = vsyncpa [#allocation4], 0
    %11 = vsyncpa [#allocation7], 0
    %12 = vsyncpa [#allocation5], 0
    // Predicated region
    $region2: #{tpu_custom_call.1} parent=1 // pred_check
      _
    $region3: #{tpu_custom_call.1} parent=1 // pred_check_branch
      %14 = sbr.rel (0) target = $region5
    $region4: #{tpu_custom_call.1} parent=1 // pred_region
      %s16 = ssub.s32 128, 128
      %17 = vsyncadd [#allocation4], %s16
      %s18 = sshll.u32 [#allocation3], 4
      %s19 = int_to_ptr.vmem [resolvable:$true] %s18
      %24 = dma.hbm_to_vmem [thread:$0]  %s0, 128, %s19, [#allocation4], 64, 64, 4
    $region5: #{tpu_custom_call.1} parent=1 // pred_fallthru
      _
    // Predicated region
    $region6: #{tpu_custom_call.1} parent=1 // pred_check
      _
    $region7: #{tpu_custom_call.1} parent=1 // pred_check_branch
      %26 = sbr.rel (0) target = $region9
    $region8: #{tpu_custom_call.1} parent=1 // pred_region
      %s28 = ssub.s32 1024, 1024
      %29 = vsyncadd [#allocation7], %s28
      %s30 = sshll.u32 [#allocation6], 4
      %s31 = int_to_ptr.vmem [resolvable:$true] %s30
      %36 = dma.hbm_to_vmem [thread:$0]  %s1, 1024, %s31, [#allocation7], 64, 64, 4
    $region9: #{tpu_custom_call.1} parent=1 // pred_fallthru
      _
    // Predicated region
    $region10: #{tpu_custom_call.1} parent=1 // pred_check
      _
    $region11: #{tpu_custom_call.1} parent=1 // pred_check_branch
      %38 = sbr.rel (0) target = $region13
    $region12: #{tpu_custom_call.1} parent=1 // pred_region
      _
    $region13: #{tpu_custom_call.1} parent=1 // pred_fallthru
      _
    // Predicated region
    $region14: #{tpu_custom_call.1} parent=1 // pred_check
      _
    $region15: #{tpu_custom_call.1} parent=1 // pred_check_branch
      %40 = sbr.rel (0) target = $region17
    $region16: #{tpu_custom_call.1} parent=1 // pred_region
      %s42 = ssub.s32 1024, 1024
      %43 = vsyncadd [#allocation7], %s42
      %s44 = sshll.u32 [#allocation8], 4
      %s45 = int_to_ptr.vmem [resolvable:$true] %s44
      %50 = dma.hbm_to_vmem [thread:$0]  %s3, 1024, %s45, [#allocation7], 64, 64, 4
    $region17: #{tpu_custom_call.1} parent=1 // pred_fallthru
      _
    // Predicated region
    $region18: #{tpu_custom_call.1} parent=1 // pred_check
      _
    $region19: #{tpu_custom_call.1} parent=1 // pred_check_branch
      %52 = sbr.rel (0) target = $region21
    $region20: #{tpu_custom_call.1} parent=1 // pred_region
      _
    $region21: #{tpu_custom_call.1} parent=1 // pred_fallthru
      _
    // Predicated region
    $region22: #{tpu_custom_call.1} parent=1 // pred_check
      _
    $region23: #{tpu_custom_call.1} parent=1 // pred_check_branch
      %54 = sbr.rel (0) target = $region25
    $region24: #{tpu_custom_call.1} parent=1 // pred_region
      %55 = dma.done [#allocation4], 128
    $region25: #{tpu_custom_call.1} parent=1 // pred_fallthru
      _
    // Predicated region
    $region26: #{tpu_custom_call.1} parent=1 // pred_check
      _
    $region27: #{tpu_custom_call.1} parent=1 // pred_check_branch
      %57 = sbr.rel (0) target = $region29
    $region28: #{tpu_custom_call.1} parent=1 // pred_region
      %58 = dma.done [#allocation7], 1024
    $region29: #{tpu_custom_call.1} parent=1 // pred_fallthru
      _
    // Predicated region
    $region30: #{tpu_custom_call.1} parent=1 // pred_check
      _
    $region31: #{tpu_custom_call.1} parent=1 // pred_check_branch
      %60 = sbr.rel (0) target = $region33
    $region32: #{tpu_custom_call.1} parent=1 // pred_region
      %61 = dma.done [#allocation7], 1024
    $region33: #{tpu_custom_call.1} parent=1 // pred_fallthru
      _
    %p63 = scmp.eq.s32.totalorder 0, 0
    // Predicated region
    $region34: #{tpu_custom_call.1} parent=1 // pred_check
      %p64 = pneg %p63
    $region35: #{tpu_custom_call.1} parent=1 // pred_check_branch
      %66 = sbr.rel (%p64) target = $region37
    $region36: #{tpu_custom_call.1} parent=1 // pred_region
      %67 = vst [vmem:[#allocation2] sm:$0xff] 0.0
      %68 = vst [vmem:[#allocation2 + $0x8] sm:$0xff] 0.0
    $region37: #{tpu_custom_call.1} parent=1 // pred_fallthru
      _
    %v69 = vld [vmem:[#allocation3] sm:$0xf]
    %v70 = vld [vmem:[#allocation3 + $0x4] sm:$0xf]
    %v71 = vld [vmem:[#allocation6] sm:$0xf]
    %v72 = vld [vmem:[#allocation6 + $0x4] sm:$0xf]
    %v73 = vld [vmem:[#allocation6 + $0x8] sm:$0xf]
    %v74 = vld [vmem:[#allocation6 + $0xc] sm:$0xf]
    %v75 = vld [vmem:[#allocation6 + $0x10] sm:$0xf]
    %v76 = vld [vmem:[#allocation6 + $0x14] sm:$0xf]
    %v77 = vld [vmem:[#allocation6 + $0x18] sm:$0xf]
    %v78 = vld [vmem:[#allocation6 + $0x1c] sm:$0xf]
    %v79 = vld [vmem:[#allocation6 + $0x20] sm:$0xf]
    %v80 = vld [vmem:[#allocation6 + $0x24] sm:$0xf]
    %v81 = vld [vmem:[#allocation6 + $0x28] sm:$0xf]
    %v82 = vld [vmem:[#allocation6 + $0x2c] sm:$0xf]
    %v83 = vld [vmem:[#allocation6 + $0x30] sm:$0xf]
    %v84 = vld [vmem:[#allocation6 + $0x34] sm:$0xf]
    %v85 = vld [vmem:[#allocation6 + $0x38] sm:$0xf]
    %v86 = vld [vmem:[#allocation6 + $0x3c] sm:$0xf]
    %v89 = vunpack.c.l.b16 %v69
    %v90 = vunpack.c.l.b16 %v70
    %v91 = vpack.c.b16 %v90, %v89
    %v109 = vunpack.c.l.b16 %v71
    %v110 = vunpack.c.l.b16 %v72
    %v111 = vunpack.c.l.b16 %v73
    %v112 = vunpack.c.l.b16 %v74
    %v113 = vunpack.c.l.b16 %v75
    %v114 = vunpack.c.l.b16 %v76
    %v115 = vunpack.c.l.b16 %v77
    %v116 = vunpack.c.l.b16 %v78
    %v117 = vunpack.c.l.b16 %v79
    %v118 = vunpack.c.l.b16 %v80
    %v119 = vunpack.c.l.b16 %v81
    %v120 = vunpack.c.l.b16 %v82
    %v121 = vunpack.c.l.b16 %v83
    %v122 = vunpack.c.l.b16 %v84
    %v123 = vunpack.c.l.b16 %v85
    %v124 = vunpack.c.l.b16 %v86
    %v125 = vpack.c.b16 %v110, %v109
    %v126 = vpack.c.b16 %v112, %v111
    %v127 = vpack.c.b16 %v114, %v113
    %v128 = vpack.c.b16 %v116, %v115
    %v129 = vpack.c.b16 %v118, %v117
    %v130 = vpack.c.b16 %v120, %v119
    %v131 = vpack.c.b16 %v122, %v121
    %v132 = vpack.c.b16 %v124, %v123
    %141 = vmatprep.subr.bf16.mxu0 0
    %142 = vmatpush1.bf16.msra.mxu0 %v132
    %143 = vmatprep.subr.bf16.mxu0 0
    %144 = vmatpush1.bf16.msra.mxu0 %v131
    %145 = vmatprep.subr.bf16.mxu0 0
    %146 = vmatpush1.bf16.msra.mxu0 %v130
    %147 = vmatprep.subr.bf16.mxu0 0
    %148 = vmatpush1.bf16.msra.mxu0 %v129
    %149 = vmatprep.subr.bf16.mxu0 0
    %150 = vmatpush1.bf16.msra.mxu0 %v128
    %151 = vmatprep.subr.bf16.mxu0 0
    %152 = vmatpush1.bf16.msra.mxu0 %v127
    %153 = vmatprep.subr.bf16.mxu0 0
    %154 = vmatpush1.bf16.msra.mxu0 %v126
    %155 = vmatprep.subr.bf16.mxu0 0
    %156 = vmatpush1.bf16.msra.mxu0 %v125
    %157 = vmatprep.subr.bf16.mxu0 0
    %158 = vmatpush2.bf16.msra.mxu0 0
    %159 = vmatprep.subr.bf16.mxu0 0
    %160 = vmatpush2.bf16.msra.mxu0 0
    %161 = vmatprep.subr.bf16.mxu0 0
    %162 = vmatpush2.bf16.msra.mxu0 0
    %163 = vmatprep.subr.bf16.mxu0 0
    %164 = vmatpush2.bf16.msra.mxu0 0
    %165 = vmatprep.subr.bf16.mxu0 0
    %166 = vmatpush2.bf16.msra.mxu0 0
    %167 = vmatprep.subr.bf16.mxu0 0
    %168 = vmatpush2.bf16.msra.mxu0 0
    %169 = vmatprep.subr.bf16.mxu0 0
    %170 = vmatpush2.bf16.msra.mxu0 0
    %171 = vmatprep.subr.bf16.mxu0 0
    %172 = vmatpush2.bf16.msra.mxu0 0
    %173 = vmatprep.mubr.bf16.mxu0 0
    %174 = vmatmul.mubr.bf16.gmra.mxu0 %v91
    %v175 = vpop.f32.mrf.mxu0
    %v176 = vadd.f32 0.0, %v175
    %v177 = vpop.f32.mrf.mxu0
    %v178 = vpop.f32.mrf.mxu0
    %v179 = vadd.f32 0.0, %v178
    %v180 = vpop.f32.mrf.mxu0
    %181 = vdwg.mxu0
    %v182 = vpack.c.bf16 %v179, %v176
    %v183 = vld [vmem:[%s2] sm:$0x1]
    %v184 = vpack.c.bf16 %v183, %v183
    %v186 = vpack.i.b16 %v184, %v184
    %v188 = vlaneseq
    %v189 = vshrl.u32 %v188, 7
    %v190 = vsub.s32 0, %v189
    %v191 = vrot.slane %v186, %v190
    %v192 = vadd.bf16 %v182, %v191
    %v193 = vmax.bf16 %v192, 0
    %v194 = vld [vmem:[#allocation2] sm:$0xff]
    %v195 = vld [vmem:[#allocation2 + $0x8] sm:$0xff]
    %v196 = vld [vmem:[#allocation8] sm:$0xf]
    %v197 = vld [vmem:[#allocation8 + $0x4] sm:$0xf]
    %v198 = vld [vmem:[#allocation8 + $0x8] sm:$0xf]
    %v199 = vld [vmem:[#allocation8 + $0xc] sm:$0xf]
    %v200 = vld [vmem:[#allocation8 + $0x10] sm:$0xf]
    %v201 = vld [vmem:[#allocation8 + $0x14] sm:$0xf]
    %v202 = vld [vmem:[#allocation8 + $0x18] sm:$0xf]
    %v203 = vld [vmem:[#allocation8 + $0x1c] sm:$0xf]
    %v204 = vld [vmem:[#allocation8 + $0x20] sm:$0xf]
    %v205 = vld [vmem:[#allocation8 + $0x24] sm:$0xf]
    %v206 = vld [vmem:[#allocation8 + $0x28] sm:$0xf]
    %v207 = vld [vmem:[#allocation8 + $0x2c] sm:$0xf]
    %v208 = vld [vmem:[#allocation8 + $0x30] sm:$0xf]
    %v209 = vld [vmem:[#allocation8 + $0x34] sm:$0xf]
    %v210 = vld [vmem:[#allocation8 + $0x38] sm:$0xf]
    %v211 = vld [vmem:[#allocation8 + $0x3c] sm:$0xf]
    %v228 = vunpack.c.l.b16 %v196
    %v229 = vunpack.c.l.b16 %v197
    %v230 = vunpack.c.l.b16 %v198
    %v231 = vunpack.c.l.b16 %v199
    %v232 = vunpack.c.l.b16 %v200
    %v233 = vunpack.c.l.b16 %v201
    %v234 = vunpack.c.l.b16 %v202
    %v235 = vunpack.c.l.b16 %v203
    %v236 = vunpack.c.l.b16 %v204
    %v237 = vunpack.c.l.b16 %v205
    %v238 = vunpack.c.l.b16 %v206
    %v239 = vunpack.c.l.b16 %v207
    %v240 = vunpack.c.l.b16 %v208
    %v241 = vunpack.c.l.b16 %v209
    %v242 = vunpack.c.l.b16 %v210
    %v243 = vunpack.c.l.b16 %v211
    %v244 = vpack.c.b16 %v229, %v228
    %v245 = vpack.c.b16 %v231, %v230
    %v246 = vpack.c.b16 %v233, %v232
    %v247 = vpack.c.b16 %v235, %v234
    %v248 = vpack.c.b16 %v237, %v236
    %v249 = vpack.c.b16 %v239, %v238
    %v250 = vpack.c.b16 %v241, %v240
    %v251 = vpack.c.b16 %v243, %v242
    %260 = vmatprep.subr.bf16.mxu0 0
    %261 = vmatpush1.bf16.msra.mxu0 %v251
    %262 = vmatprep.subr.bf16.mxu0 0
    %263 = vmatpush1.bf16.msra.mxu0 %v250
    %264 = vmatprep.subr.bf16.mxu0 0
    %265 = vmatpush1.bf16.msra.mxu0 %v249
    %266 = vmatprep.subr.bf16.mxu0 0
    %267 = vmatpush1.bf16.msra.mxu0 %v248
    %268 = vmatprep.subr.bf16.mxu0 0
    %269 = vmatpush1.bf16.msra.mxu0 %v247
    %270 = vmatprep.subr.bf16.mxu0 0
    %271 = vmatpush1.bf16.msra.mxu0 %v246
    %272 = vmatprep.subr.bf16.mxu0 0
    %273 = vmatpush1.bf16.msra.mxu0 %v245
    %274 = vmatprep.subr.bf16.mxu0 0
    %275 = vmatpush1.bf16.msra.mxu0 %v244
    %276 = vmatprep.subr.bf16.mxu0 0
    %277 = vmatpush2.bf16.msra.mxu0 0
    %278 = vmatprep.subr.bf16.mxu0 0
    %279 = vmatpush2.bf16.msra.mxu0 0
    %280 = vmatprep.subr.bf16.mxu0 0
    %281 = vmatpush2.bf16.msra.mxu0 0
    %282 = vmatprep.subr.bf16.mxu0 0
    %283 = vmatpush2.bf16.msra.mxu0 0
    %284 = vmatprep.subr.bf16.mxu0 0
    %285 = vmatpush2.bf16.msra.mxu0 0
    %286 = vmatprep.subr.bf16.mxu0 0
    %287 = vmatpush2.bf16.msra.mxu0 0
    %288 = vmatprep.subr.bf16.mxu0 0
    %289 = vmatpush2.bf16.msra.mxu0 0
    %290 = vmatprep.subr.bf16.mxu0 0
    %291 = vmatpush2.bf16.msra.mxu0 0
    %292 = vmatprep.mubr.bf16.mxu0 0
    %293 = vmatmul.mubr.bf16.gmra.mxu0 %v193
    %v294 = vpop.f32.mrf.mxu0
    %v295 = vadd.f32 0.0, %v294
    %v296 = vpop.f32.mrf.mxu0
    %v297 = vpop.f32.mrf.mxu0
    %v298 = vadd.f32 0.0, %v297
    %v299 = vpop.f32.mrf.mxu0
    %300 = vdwg.mxu0
    %v301 = vadd.f32 %v194, %v295
    %v302 = vadd.f32 %v195, %v298
    %303 = vst [vmem:[#allocation2] sm:$0xff] %v301
    %304 = vst [vmem:[#allocation2 + $0x8] sm:$0xff] %v302
    // Predicated region
    $region38: #{tpu_custom_call.1} parent=1 // pred_check
      %p305 = pneg %p63
    $region39: #{tpu_custom_call.1} parent=1 // pred_check_branch
      %307 = sbr.rel (%p305) target = $region41
    $region40: #{tpu_custom_call.1} parent=1 // pred_region
      %v308 = vld [vmem:[#allocation2] sm:$0xff]
      %v309 = vld [vmem:[#allocation2 + $0x8] sm:$0xff]
      %v310 = vld [vmem:[%s4] sm:$0x1]
      %v312 = vlaneseq
      %v313 = vshrl.u32 %v312, 7
      %v314 = vsub.s32 0, %v313
      %v315 = vrot.slane %v310, %v314
      %v317 = vadd.f32 %v308, %v315
      %v318 = vadd.f32 %v309, %v315
      %319 = vst [vmem:[#allocation9] sm:$0xff] %v317
      %320 = vst [vmem:[#allocation9 + $0x8] sm:$0xff] %v318
    $region41: #{tpu_custom_call.1} parent=1 // pred_fallthru
      _
    // Predicated region
    $region42: #{tpu_custom_call.1} parent=1 // pred_check
      _
    $region43: #{tpu_custom_call.1} parent=1 // pred_check_branch
      %322 = sbr.rel (0) target = $region45
    $region44: #{tpu_custom_call.1} parent=1 // pred_region
      %s324 = ssub.s32 256, 256
      %325 = vsyncadd [#allocation5], %s324
      %s326 = sshll.u32 [#allocation9], 4
      %s327 = int_to_ptr.vmem [resolvable:$true] %s326
      %332 = dma.vmem_to_hbm [thread:$0]  %s327, 256, %s5, [#allocation5], 128, 128, 8
    $region45: #{tpu_custom_call.1} parent=1 // pred_fallthru
      _
    // Predicated region
    $region46: #{tpu_custom_call.1} parent=1 // pred_check
      _
    $region47: #{tpu_custom_call.1} parent=1 // pred_check_branch
      %334 = sbr.rel (0) target = $region49
    $region48: #{tpu_custom_call.1} parent=1 // pred_region
      %335 = dma.done [#allocation5], 256
    $region49: #{tpu_custom_call.1} parent=1 // pred_fallthru
      _
    %336 = vsyncpa [#allocation4], 1
    %337 = vsyncpa [#allocation7], 1
    %338 = vsyncpa [#allocation5], 1

</llo_original>
